<compile_context>
chip_gen: v6e
topology: v6e:2x2x1
jax: 0.10.0
libtpu: 0.0.40
codegen_flags: <defaults>
</compile_context>

<pallas_src>
import functools

import jax
import jax.numpy as jnp
from jax.experimental import pallas as pl
from jax.experimental.pallas import tpu as pltpu

HIDDEN_SIZE = 64


def _actor_kernel(x_ref, w1_ref, b1_ref, w2_ref, b2_ref, w3t_ref, b3_ref, o_ref):
    # x_ref : (Bt, S) f32   -- batch tile (sublane-major coming in)
    # w1    : (H, S) bf16   b1: (H, 1) f32
    # w2    : (H, H) bf16   b2: (H, 1) f32
    # w3t   : (H, A) f32    b3: (A, 1) f32
    # o_ref : (A, Bt) f32   -- lane-dense output block
    x = x_ref[...].astype(jnp.bfloat16)                       # bf16 MXU operand

    # Layer 1: contract S of both operands (no explicit transpose needed);
    # result (H, Bt) puts the batch on the lane axis.  f32 MXU accumulation.
    h1 = jnp.einsum("hs,bs->hb", w1_ref[...], x,
                    preferred_element_type=jnp.float32) + b1_ref[...]
    # Bias-add + ReLU in f32 (v5e-safe), but keep only bf16 live between layers
    # to halve vreg pressure / spill traffic at large batch tiles.
    h1 = jnp.maximum(h1, 0.0).astype(jnp.bfloat16)

    # Layer 2: (H, H) @ (H, Bt) -> (H, Bt), MXU, f32 accumulation.
    h2 = jnp.dot(w2_ref[...], h1, preferred_element_type=jnp.float32) + b2_ref[...]
    h2 = jnp.maximum(h2, 0.0)                                  # f32; feeds VPU layer 3

    # Layer 3 off the MXU: A per-row broadcast-multiplies (VPU) + cross-sublane
    # reduces (XLU).  A (= action_size) is a small static int, so this unrolls.
    w3t = w3t_ref[...]                                         # (H, A) f32, tiny
    rows = [jnp.sum(w3t[:, a:a + 1] * h2, axis=0, keepdims=True)
            for a in range(w3t.shape[1])]
    logits = jnp.concatenate(rows, axis=0) + b3_ref[...]       # (A, Bt)

    # TODO(synk): sigmoid could be rewritten as exp(-x)/pl.reciprocal(1+e, approx=True)
    # if a bundle dump shows the logistic lowering landing on VALU; minor at A*Bt elems.
    o_ref[...] = jax.nn.sigmoid(logits)


def _pick_batch_tile(B, requested):
    """128-aligned (lane) batch tile.

    Big enough to amortize the ~0.35us per-grid-step overhead, but capped at
    half the 128-aligned batch whenever that still leaves >=2 grid steps so the
    'parallel' axis can shard across both v7x TensorCores."""
    b128 = pl.cdiv(B, 128) * 128
    tile = 1024 if requested is None else requested
    tile = max(128, (tile // 128) * 128)
    if b128 >= 256:
        tile = min(tile, (b128 // 2) // 128 * 128)
    else:
        tile = min(tile, b128)
    return tile


@functools.partial(jax.jit, static_argnames=("batch_tile",))
def actor_forward(state, params, *, batch_tile=None):
    """state: (B, state_size) f32.  params: w1,w2 bf16 (out,in); w3 f32 (out,in);
    biases f32 (out,1).  Returns (B, action_size) f32 (PyTorch layout)."""
    B, S = state.shape
    H = params["w1"].shape[0]
    A = params["w3"].shape[0]

    tile = _pick_batch_tile(B, batch_tile)
    grid = (pl.cdiv(B, tile),)
    padded_B = grid[0] * tile

    rep = lambda i: (0, 0)  # weights / biases replicated across the batch grid

    cost = pl.CostEstimate(
        flops=2 * padded_B * (S * H + H * H + H * A),
        transcendentals=padded_B * A,                       # sigmoid
        bytes_accessed=(padded_B * S * 4                    # f32 state (read in-kernel)
                        + (S * H + H * H) * 2 + H * A * 4   # weights
                        + (2 * H + A) * 4                   # biases
                        + padded_B * A * 4),                # f32 output
    )

    # No wrapper-side pad/transpose/cast: Pallas masks the ragged last block and
    # the cast/contraction happens in-kernel, so the only HBM passes are the
    # pipelined input reads and lane-dense output writes.
    out_t = pl.pallas_call(
        _actor_kernel,
        out_shape=jax.ShapeDtypeStruct((A, B), jnp.float32),
        grid_spec=pltpu.PrefetchScalarGridSpec(
            num_scalar_prefetch=0,
            grid=grid,
            in_specs=[
                pl.BlockSpec((tile, S), lambda i: (i, 0)),   # state tile (batch-major)
                pl.BlockSpec((H, S), rep),                   # w1
                pl.BlockSpec((H, 1), rep),                   # b1
                pl.BlockSpec((H, H), rep),                   # w2
                pl.BlockSpec((H, 1), rep),                   # b2
                pl.BlockSpec((H, A), rep),                   # w3^T (VPU layer-3 operand)
                pl.BlockSpec((A, 1), rep),                   # b3
            ],
            out_specs=pl.BlockSpec((A, tile), lambda i: (0, i)),
        ),
        compiler_params=pltpu.CompilerParams(
            dimension_semantics=("parallel",),   # batch tiles are independent
            vmem_limit_bytes=32 * 1024 * 1024,   # explicit, safe on v7x's 64 MiB
        ),
        cost_estimate=cost,
    )(state, params["w1"], params["b1"], params["w2"], params["b2"],
      params["w3"].T, params["b3"])

    # PyTorch-compatible (B, A) layout; a consumer that accepts (A, B) could
    # skip this transpose entirely (it is a tiny fused op under jit).
    return out_t.T


def init_actor_params(key, state_size, action_size, hidden=HIDDEN_SIZE):
    """nn.Linear-style init (uniform +/- 1/sqrt(fan_in)), PyTorch (out, in) layout.

    w1/w2 are bf16 (MXU operands); w3 stays f32 (layer 3 runs on the VPU/XLU);
    biases are f32 (out, 1)."""
    ks = jax.random.split(key, 6)

    def lin(kw, kb, fan_in, fan_out, w_dtype):
        bound = 1.0 / jnp.sqrt(jnp.float32(fan_in))
        w = jax.random.uniform(kw, (fan_out, fan_in), jnp.float32, -bound, bound)
        b = jax.random.uniform(kb, (fan_out, 1), jnp.float32, -bound, bound)
        return w.astype(w_dtype), b

    w1, b1 = lin(ks[0], ks[1], state_size, hidden, jnp.bfloat16)
    w2, b2 = lin(ks[2], ks[3], hidden, hidden, jnp.bfloat16)
    w3, b3 = lin(ks[4], ks[5], hidden, action_size, jnp.float32)
    return {"w1": w1, "b1": b1, "w2": w2, "b2": b2, "w3": w3, "b3": b3}


def actor_reference(state, p):
    """Pure-JAX reference with the same precision recipe as the kernel."""
    x = state.astype(jnp.bfloat16)
    h1 = jnp.maximum(
        jnp.dot(x, p["w1"].T, preferred_element_type=jnp.float32) + p["b1"].T, 0.0)
    h2 = jnp.maximum(
        jnp.dot(h1.astype(jnp.bfloat16), p["w2"].T,
                preferred_element_type=jnp.float32) + p["b2"].T, 0.0)
    logits = jnp.dot(h2, p["w3"].T, preferred_element_type=jnp.float32) + p["b3"].T
    return jax.nn.sigmoid(logits)


if __name__ == "__main__":
    key = jax.random.PRNGKey(0)
    k_param, k_small, k_big = jax.random.split(key, 3)

    state_size, action_size = 16, 4
    params = init_actor_params(k_param, state_size, action_size)

    # Small RL-style batch (single ragged block: 8 rows inside a 128-wide tile).
    state_small = jax.random.normal(k_small, (8, state_size), jnp.float32)
    out_small = jax.block_until_ready(actor_forward(state_small, params))
    ref_small = actor_reference(state_small, params)
    assert out_small.shape == (8, action_size)
    assert jnp.allclose(out_small, ref_small, atol=1e-3, rtol=1e-3), "small-batch mismatch"

    # Multi-tile ragged batch (3 parallel grid steps, masked last block).
    state_big = jax.random.normal(k_big, (300, state_size), jnp.float32)
    out_big = jax.block_until_ready(actor_forward(state_big, params))
    ref_big = actor_reference(state_big, params)
    assert out_big.shape == (300, action_size)
    assert jnp.allclose(out_big, ref_big, atol=1e-3, rtol=1e-3), "multi-tile mismatch"

    print("KERNEL_OK")
</pallas_src>

<mosaic_0001>
module attributes {stable_mosaic.version = 11 : i64} {
  func.func @_actor_kernel(%arg0: i32, %arg1: memref<128x16xf32, #tpu.memory_space<vmem>>, %arg2: memref<64x16xbf16, #tpu.memory_space<vmem>>, %arg3: memref<64x1xf32, #tpu.memory_space<vmem>>, %arg4: memref<64x64xbf16, #tpu.memory_space<vmem>>, %arg5: memref<64x1xf32, #tpu.memory_space<vmem>>, %arg6: memref<64x4xf32, #tpu.memory_space<vmem>>, %arg7: memref<4x1xf32, #tpu.memory_space<vmem>>, %arg8: memref<4x128xf32, #tpu.memory_space<vmem>>) attributes {dimension_semantics = [#tpu.dimension_semantics<parallel>], iteration_bounds = array<i64: 1>, scalar_prefetch = 0 : i64, scratch_operands = 0 : i64, tpu.core_type = #tpu.core_type<tc>, window_params = [{transform_indices = @transform_0, window_bounds = array<i64: 128, 16>}, {pipeline_mode = #tpu.pipeline_mode<synchronous>, transform_indices = @transform_1, window_bounds = array<i64: 64, 16>}, {pipeline_mode = #tpu.pipeline_mode<synchronous>, transform_indices = @transform_2, window_bounds = array<i64: 64, 1>}, {pipeline_mode = #tpu.pipeline_mode<synchronous>, transform_indices = @transform_3, window_bounds = array<i64: 64, 64>}, {pipeline_mode = #tpu.pipeline_mode<synchronous>, transform_indices = @transform_4, window_bounds = array<i64: 64, 1>}, {pipeline_mode = #tpu.pipeline_mode<synchronous>, transform_indices = @transform_5, window_bounds = array<i64: 64, 4>}, {pipeline_mode = #tpu.pipeline_mode<synchronous>, transform_indices = @transform_6, window_bounds = array<i64: 4, 1>}, {transform_indices = @transform_7, window_bounds = array<i64: 4, 128>}]} {
    %c0 = arith.constant 0 : index
    %c0_0 = arith.constant 0 : index
    %0 = vector.load %arg1[%c0, %c0_0] : memref<128x16xf32, #tpu.memory_space<vmem>>, vector<128x16xf32>
    %1 = arith.truncf %0 : vector<128x16xf32> to vector<128x16xbf16>
    %c0_1 = arith.constant 0 : index
    %c0_2 = arith.constant 0 : index
    %2 = vector.load %arg2[%c0_1, %c0_2] : memref<64x16xbf16, #tpu.memory_space<vmem>>, vector<64x16xbf16>
    "tpu.trace_start"() <{level = 10 : i32, message = "hs,bs->hb"}> : () -> ()
    %cst = arith.constant dense<0.000000e+00> : vector<64x128xf32>
    %3 = tpu.matmul %2, %1, %cst {dimension_numbers = #tpu.dot_dimension_numbers<[1], [1], [0], [0], [0, 0, 1, 0], [], []>} : vector<64x16xbf16>, vector<128x16xbf16>, vector<64x128xf32> -> vector<64x128xf32>
    "tpu.trace_stop"() : () -> ()
    %c0_3 = arith.constant 0 : index
    %c0_4 = arith.constant 0 : index
    %4 = vector.load %arg3[%c0_3, %c0_4] : memref<64x1xf32, #tpu.memory_space<vmem>>, vector<64x1xf32>
    %5 = vector.broadcast %4 : vector<64x1xf32> to vector<64x128xf32>
    %6 = arith.addf %3, %5 : vector<64x128xf32>
    %cst_5 = arith.constant 0.000000e+00 : f32
    %7 = vector.broadcast %cst_5 : f32 to vector<64x128xf32>
    %8 = arith.maximumf %6, %7 : vector<64x128xf32>
    %9 = arith.truncf %8 : vector<64x128xf32> to vector<64x128xbf16>
    %c0_6 = arith.constant 0 : index
    %c0_7 = arith.constant 0 : index
    %10 = vector.load %arg4[%c0_6, %c0_7] : memref<64x64xbf16, #tpu.memory_space<vmem>>, vector<64x64xbf16>
    %cst_8 = arith.constant dense<0.000000e+00> : vector<64x128xf32>
    %11 = tpu.matmul %10, %9, %cst_8 {dimension_numbers = #tpu.dot_dimension_numbers<[1], [0], [0], [1], [0, 0, 1, 1], [], []>} : vector<64x64xbf16>, vector<64x128xbf16>, vector<64x128xf32> -> vector<64x128xf32>
    %c0_9 = arith.constant 0 : index
    %c0_10 = arith.constant 0 : index
    %12 = vector.load %arg5[%c0_9, %c0_10] : memref<64x1xf32, #tpu.memory_space<vmem>>, vector<64x1xf32>
    %13 = vector.broadcast %12 : vector<64x1xf32> to vector<64x128xf32>
    %14 = arith.addf %11, %13 : vector<64x128xf32>
    %cst_11 = arith.constant 0.000000e+00 : f32
    %15 = vector.broadcast %cst_11 : f32 to vector<64x128xf32>
    %16 = arith.maximumf %14, %15 : vector<64x128xf32>
    %c0_12 = arith.constant 0 : index
    %c0_13 = arith.constant 0 : index
    %17 = vector.load %arg6[%c0_12, %c0_13] : memref<64x4xf32, #tpu.memory_space<vmem>>, vector<64x4xf32>
    %18 = vector.extract_strided_slice %17 {offsets = [0, 0], sizes = [64, 1], strides = [1, 1]} : vector<64x4xf32> to vector<64x1xf32>
    %19 = vector.broadcast %18 : vector<64x1xf32> to vector<64x128xf32>
    %20 = arith.mulf %19, %16 : vector<64x128xf32>
    %cst_14 = arith.constant dense<0.000000e+00> : vector<128xf32>
    %21 = vector.multi_reduction <add>, %20, %cst_14 [0] : vector<64x128xf32> to vector<128xf32>
    %22 = vector.shape_cast %21 : vector<128xf32> to vector<1x128xf32>
    %23 = vector.extract_strided_slice %17 {offsets = [0, 1], sizes = [64, 1], strides = [1, 1]} : vector<64x4xf32> to vector<64x1xf32>
    %24 = vector.broadcast %23 : vector<64x1xf32> to vector<64x128xf32>
    %25 = arith.mulf %24, %16 : vector<64x128xf32>
    %cst_15 = arith.constant dense<0.000000e+00> : vector<128xf32>
    %26 = vector.multi_reduction <add>, %25, %cst_15 [0] : vector<64x128xf32> to vector<128xf32>
    %27 = vector.shape_cast %26 : vector<128xf32> to vector<1x128xf32>
    %28 = vector.extract_strided_slice %17 {offsets = [0, 2], sizes = [64, 1], strides = [1, 1]} : vector<64x4xf32> to vector<64x1xf32>
    %29 = vector.broadcast %28 : vector<64x1xf32> to vector<64x128xf32>
    %30 = arith.mulf %29, %16 : vector<64x128xf32>
    %cst_16 = arith.constant dense<0.000000e+00> : vector<128xf32>
    %31 = vector.multi_reduction <add>, %30, %cst_16 [0] : vector<64x128xf32> to vector<128xf32>
    %32 = vector.shape_cast %31 : vector<128xf32> to vector<1x128xf32>
    %33 = vector.extract_strided_slice %17 {offsets = [0, 3], sizes = [64, 1], strides = [1, 1]} : vector<64x4xf32> to vector<64x1xf32>
    %34 = vector.broadcast %33 : vector<64x1xf32> to vector<64x128xf32>
    %35 = arith.mulf %34, %16 : vector<64x128xf32>
    %cst_17 = arith.constant dense<0.000000e+00> : vector<128xf32>
    %36 = vector.multi_reduction <add>, %35, %cst_17 [0] : vector<64x128xf32> to vector<128xf32>
    %37 = vector.shape_cast %36 : vector<128xf32> to vector<1x128xf32>
    %38 = tpu.concatenate %22, %27, %32, %37 in 0 : vector<1x128xf32>, vector<1x128xf32>, vector<1x128xf32>, vector<1x128xf32> -> vector<4x128xf32>
    %c0_18 = arith.constant 0 : index
    %c0_19 = arith.constant 0 : index
    %39 = vector.load %arg7[%c0_18, %c0_19] : memref<4x1xf32, #tpu.memory_space<vmem>>, vector<4x1xf32>
    %40 = vector.broadcast %39 : vector<4x1xf32> to vector<4x128xf32>
    %41 = arith.addf %38, %40 : vector<4x128xf32>
    %42 = arith.negf %41 : vector<4x128xf32>
    %43 = math.exp %42 : vector<4x128xf32>
    %cst_20 = arith.constant 1.000000e+00 : f32
    %44 = vector.broadcast %cst_20 : f32 to vector<4x128xf32>
    %45 = arith.addf %44, %43 : vector<4x128xf32>
    %46 = arith.divf %44, %45 : vector<4x128xf32>
    %c0_21 = arith.constant 0 : index
    %c0_22 = arith.constant 0 : index
    %47 = vector.load %arg8[%c0_21, %c0_22] : memref<4x128xf32, #tpu.memory_space<vmem>>, vector<4x128xf32>
    tpu.vector_store %arg8[%c0_21, %c0_22], %46 {strides = array<i32>} : memref<4x128xf32, #tpu.memory_space<vmem>>, vector<4x128xf32>,
    return
  }
  func.func @transform_0(%arg0: i32) -> (i32, i32) {
    %c0_i32 = arith.constant 0 : i32
    %c0_i32_0 = arith.constant 0 : i32
    return %arg0, %c0_i32 : i32, i32
  }
  func.func @transform_1(%arg0: i32) -> (i32, i32) {
    %c0_i32 = arith.constant 0 : i32
    %c0_i32_0 = arith.constant 0 : i32
    %c0_i32_1 = arith.constant 0 : i32
    return %c0_i32, %c0_i32_0 : i32, i32
  }
  func.func @transform_2(%arg0: i32) -> (i32, i32) {
    %c0_i32 = arith.constant 0 : i32
    %c0_i32_0 = arith.constant 0 : i32
    %c0_i32_1 = arith.constant 0 : i32
    return %c0_i32, %c0_i32_0 : i32, i32
  }
  func.func @transform_3(%arg0: i32) -> (i32, i32) {
    %c0_i32 = arith.constant 0 : i32
    %c0_i32_0 = arith.constant 0 : i32
    %c0_i32_1 = arith.constant 0 : i32
    return %c0_i32, %c0_i32_0 : i32, i32
  }
  func.func @transform_4(%arg0: i32) -> (i32, i32) {
    %c0_i32 = arith.constant 0 : i32
    %c0_i32_0 = arith.constant 0 : i32
    %c0_i32_1 = arith.constant 0 : i32
    return %c0_i32, %c0_i32_0 : i32, i32
  }
  func.func @transform_5(%arg0: i32) -> (i32, i32) {
    %c0_i32 = arith.constant 0 : i32
    %c0_i32_0 = arith.constant 0 : i32
    %c0_i32_1 = arith.constant 0 : i32
    return %c0_i32, %c0_i32_0 : i32, i32
  }
  func.func @transform_6(%arg0: i32) -> (i32, i32) {
    %c0_i32 = arith.constant 0 : i32
    %c0_i32_0 = arith.constant 0 : i32
    %c0_i32_1 = arith.constant 0 : i32
    return %c0_i32, %c0_i32_0 : i32, i32
  }
  func.func @transform_7(%arg0: i32) -> (i32, i32) {
    %c0_i32 = arith.constant 0 : i32
    %c0_i32_0 = arith.constant 0 : i32
    return %c0_i32, %arg0 : i32, i32
  }
}

</mosaic_0001>

<llo_original>
// kernel: actor_forward.1
$region0: #{actor_forward.1}
  #allocation0 [shape = 'u32[]', space=smem, size = 0x4, offset = 0x4, fixed_abs, tag = 'smem constant byte address 0x4 - core index']
  #allocation1 [shape = 'u32[144,128]{1,0:T(1,128)}', space=vmem, size = 0x12000, scoped, tag = 'internal scratch']
  %s0 = inlined_call_operand.vmem [shape: f32[8,16], index: 0, kind: input, shape index: {}]
  %s1 = inlined_call_operand.vmem [shape: bf16[64,16], index: 1, kind: input, shape index: {}]
  %s2 = inlined_call_operand.vmem [shape: f32[64,1], index: 2, kind: input, shape index: {}]
  %s3 = inlined_call_operand.vmem [shape: bf16[64,64], index: 3, kind: input, shape index: {}]
  %s4 = inlined_call_operand.vmem [shape: f32[64,1], index: 4, kind: input, shape index: {}]
  %s5 = inlined_call_operand.vmem [shape: f32[64,4], index: 5, kind: input, shape index: {}]
  %s6 = inlined_call_operand.vmem [shape: f32[4,1], index: 6, kind: input, shape index: {}]
  %s7 = inlined_call_operand.hbm [shape: f32[4,8], index: 7, kind: output, shape index: {}]
  %s8 = sld [smem:[#allocation0]]
  $region38: #{actor_forward.1} parent=0
    _
  %s10 = ssub.s32 1, %s8
  %s11 = scalar_select 0, %s10, %s8
  $region1: #{actor_forward.1} parent=0
    #allocation2 [shape = 'u8[2048]{0}', space=vmem, size = 0x800, scoped, tag = 'output window, operand 0, single buffered']
    #allocation3 [shape = 's32[1]{0}', space=sflag, size = 0x4, scoped, tag = 'scoped memory for actor_forward.1']
    %12 = vsyncpa [#allocation3], 0
    // Predicated region
    $region2: #{actor_forward.1} parent=1 // pred_check
      _
    $region3: #{actor_forward.1} parent=1 // pred_check_branch
      %14 = sbr.rel (0) target = $region5
    $region4: #{actor_forward.1} parent=1 // pred_region
      _
    $region5: #{actor_forward.1} parent=1 // pred_fallthru
      _
    // Predicated region
    $region6: #{actor_forward.1} parent=1 // pred_check
      _
    $region7: #{actor_forward.1} parent=1 // pred_check_branch
      %16 = sbr.rel (0) target = $region9
    $region8: #{actor_forward.1} parent=1 // pred_region
      _
    $region9: #{actor_forward.1} parent=1 // pred_fallthru
      _
    // Predicated region
    $region10: #{actor_forward.1} parent=1 // pred_check
      _
    $region11: #{actor_forward.1} parent=1 // pred_check_branch
      %18 = sbr.rel (0) target = $region13
    $region12: #{actor_forward.1} parent=1 // pred_region
      _
    $region13: #{actor_forward.1} parent=1 // pred_fallthru
      _
    // Predicated region
    $region14: #{actor_forward.1} parent=1 // pred_check
      _
    $region15: #{actor_forward.1} parent=1 // pred_check_branch
      %20 = sbr.rel (0) target = $region17
    $region16: #{actor_forward.1} parent=1 // pred_region
      _
    $region17: #{actor_forward.1} parent=1 // pred_fallthru
      _
    // Predicated region
    $region18: #{actor_forward.1} parent=1 // pred_check
      _
    $region19: #{actor_forward.1} parent=1 // pred_check_branch
      %22 = sbr.rel (0) target = $region21
    $region20: #{actor_forward.1} parent=1 // pred_region
      _
    $region21: #{actor_forward.1} parent=1 // pred_fallthru
      _
    // Predicated region
    $region22: #{actor_forward.1} parent=1 // pred_check
      _
    $region23: #{actor_forward.1} parent=1 // pred_check_branch
      %24 = sbr.rel (0) target = $region25
    $region24: #{actor_forward.1} parent=1 // pred_region
      _
    $region25: #{actor_forward.1} parent=1 // pred_fallthru
      _
    // Predicated region
    $region26: #{actor_forward.1} parent=1 // pred_check
      _
    $region27: #{actor_forward.1} parent=1 // pred_check_branch
      %26 = sbr.rel (0) target = $region29
    $region28: #{actor_forward.1} parent=1 // pred_region
      _
    $region29: #{actor_forward.1} parent=1 // pred_fallthru
      _
    %v28 = vld [vmem:[%s0] sm:$0xff]
    %v29 = vld [vmem:[%s0 + $0x8] sm:$0xff]
    %v30 = vld [vmem:[%s0 + $0x10] sm:$0xff]
    %v31 = vld [vmem:[%s0 + $0x18] sm:$0xff]
    %v32 = vld [vmem:[%s0 + $0x20] sm:$0xff]
    %v33 = vld [vmem:[%s0 + $0x28] sm:$0xff]
    %v34 = vld [vmem:[%s0 + $0x30] sm:$0xff]
    %v35 = vld [vmem:[%s0 + $0x38] sm:$0xff]
    %v36 = vld [vmem:[%s0 + $0x40] sm:$0xff]
    %v37 = vld [vmem:[%s0 + $0x48] sm:$0xff]
    %v38 = vld [vmem:[%s0 + $0x50] sm:$0xff]
    %v39 = vld [vmem:[%s0 + $0x58] sm:$0xff]
    %v40 = vld [vmem:[%s0 + $0x60] sm:$0xff]
    %v41 = vld [vmem:[%s0 + $0x68] sm:$0xff]
    %v42 = vld [vmem:[%s0 + $0x70] sm:$0xff]
    %v43 = vld [vmem:[%s0 + $0x78] sm:$0xff]
    %v44 = vpack.c.bf16 %v29, %v28
    %v45 = vpack.c.bf16 %v31, %v30
    %v46 = vpack.c.bf16 %v33, %v32
    %v47 = vpack.c.bf16 %v35, %v34
    %v48 = vpack.c.bf16 %v37, %v36
    %v49 = vpack.c.bf16 %v39, %v38
    %v50 = vpack.c.bf16 %v41, %v40
    %v51 = vpack.c.bf16 %v43, %v42
    %v52 = vld [vmem:[%s1] sm:$0xf]
    %v53 = vld [vmem:[%s1 + $0x4] sm:$0xf]
    %v54 = vld [vmem:[%s1 + $0x8] sm:$0xf]
    %v55 = vld [vmem:[%s1 + $0xc] sm:$0xf]
    %v56 = vld [vmem:[%s1 + $0x10] sm:$0xf]
    %v57 = vld [vmem:[%s1 + $0x14] sm:$0xf]
    %v58 = vld [vmem:[%s1 + $0x18] sm:$0xf]
    %v59 = vld [vmem:[%s1 + $0x1c] sm:$0xf]
    %v60 = vld [vmem:[%s2] sm:$0xff]
    %v61 = vld [vmem:[%s2 + $0x8] sm:$0xff]
    %v62 = vld [vmem:[%s2 + $0x10] sm:$0xff]
    %v63 = vld [vmem:[%s2 + $0x18] sm:$0xff]
    %v64 = vld [vmem:[%s2 + $0x20] sm:$0xff]
    %v65 = vld [vmem:[%s2 + $0x28] sm:$0xff]
    %v66 = vld [vmem:[%s2 + $0x30] sm:$0xff]
    %v67 = vld [vmem:[%s2 + $0x38] sm:$0xff]
    %69 = vset.pattern.permute.xlu0 0
    %70 = vperm.xlu0 %69, %v60
    %v71 = vpop.permute.xlu0 %70
    %74 = vset.pattern.permute.xlu0 0
    %75 = vperm.xlu0 %74, %v61
    %v76 = vpop.permute.xlu0 %75
    %79 = vset.pattern.permute.xlu0 0
    %80 = vperm.xlu0 %79, %v62
    %v81 = vpop.permute.xlu0 %80
    %84 = vset.pattern.permute.xlu0 0
    %85 = vperm.xlu0 %84, %v63
    %v86 = vpop.permute.xlu0 %85
    %89 = vset.pattern.permute.xlu0 0
    %90 = vperm.xlu0 %89, %v64
    %v91 = vpop.permute.xlu0 %90
    %94 = vset.pattern.permute.xlu0 0
    %95 = vperm.xlu0 %94, %v65
    %v96 = vpop.permute.xlu0 %95
    %99 = vset.pattern.permute.xlu0 0
    %100 = vperm.xlu0 %99, %v66
    %v101 = vpop.permute.xlu0 %100
    %104 = vset.pattern.permute.xlu0 0
    %105 = vperm.xlu0 %104, %v67
    %v106 = vpop.permute.xlu0 %105
    %v116 = vunpack.c.l.b16 %v52
    %v117 = vunpack.c.l.b16 %v53
    %v118 = vunpack.c.l.b16 %v54
    %v119 = vunpack.c.l.b16 %v55
    %v120 = vunpack.c.l.b16 %v56
    %v121 = vunpack.c.l.b16 %v57
    %v122 = vunpack.c.l.b16 %v58
    %v123 = vunpack.c.l.b16 %v59
    %v124 = vpack.c.b16 %v117, %v116
    %v125 = vpack.c.b16 %v119, %v118
    %v126 = vpack.c.b16 %v121, %v120
    %v127 = vpack.c.b16 %v123, %v122
    %vm128 = vcmask 130048
    %v130 = vsel %vm128, %v124, 0
    %v133 = vsel %vm128, %v125, 0
    %v136 = vsel %vm128, %v126, 0
    %v139 = vsel %vm128, %v127, 0
    %v142 = vsel %vm128, %v44, 0
    %v145 = vsel %vm128, %v45, 0
    %v148 = vsel %vm128, %v46, 0
    %v151 = vsel %vm128, %v47, 0
    %v154 = vsel %vm128, %v48, 0
    %v157 = vsel %vm128, %v49, 0
    %v160 = vsel %vm128, %v50, 0
    %v163 = vsel %vm128, %v51, 0
    %165 = vmatprep.subr.bf16.mxu0 0
    %166 = vmatpush1.bf16.xpose.msra.mxu0 %v163
    %167 = vmatprep.subr.bf16.mxu0 0
    %168 = vmatpush1.bf16.xpose.msra.mxu0 %v160
    %169 = vmatprep.subr.bf16.mxu0 0
    %170 = vmatpush1.bf16.xpose.msra.mxu0 %v157
    %171 = vmatprep.subr.bf16.mxu0 0
    %172 = vmatpush1.bf16.xpose.msra.mxu0 %v154
    %173 = vmatprep.subr.bf16.mxu0 0
    %174 = vmatpush1.bf16.xpose.msra.mxu0 %v151
    %175 = vmatprep.subr.bf16.mxu0 0
    %176 = vmatpush1.bf16.xpose.msra.mxu0 %v148
    %177 = vmatprep.subr.bf16.mxu0 0
    %178 = vmatpush1.bf16.xpose.msra.mxu0 %v145
    %179 = vmatprep.subr.bf16.mxu0 0
    %180 = vmatpush1.bf16.xpose.msra.mxu0 %v142
    %181 = vmatprep.subr.bf16.mxu0 0
    %182 = vmatpush2.bf16.xpose.msra.mxu0 0
    %183 = vmatprep.subr.bf16.mxu0 0
    %184 = vmatpush2.bf16.xpose.msra.mxu0 0
    %185 = vmatprep.subr.bf16.mxu0 0
    %186 = vmatpush2.bf16.xpose.msra.mxu0 0
    %187 = vmatprep.subr.bf16.mxu0 0
    %188 = vmatpush2.bf16.xpose.msra.mxu0 0
    %189 = vmatprep.subr.bf16.mxu0 0
    %190 = vmatpush2.bf16.xpose.msra.mxu0 0
    %191 = vmatprep.subr.bf16.mxu0 0
    %192 = vmatpush2.bf16.xpose.msra.mxu0 0
    %193 = vmatprep.subr.bf16.mxu0 0
    %194 = vmatpush2.bf16.xpose.msra.mxu0 0
    %195 = vmatprep.subr.bf16.mxu0 0
    %196 = vmatpush2.bf16.xpose.msra.mxu0 0
    %197 = vmatprep.mubr.bf16.mxu0 0
    %198 = vmatmul.mubr.bf16.gmra.mxu0 %v130
    %v199 = vpop.f32.mrf.mxu0
    %v200 = vadd.f32 %v71, %v199
    %v201 = vpop.f32.mrf.mxu0
    %v202 = vpop.f32.mrf.mxu0
    %v203 = vadd.f32 %v76, %v202
    %v204 = vpop.f32.mrf.mxu0
    %205 = vmatprep.mubr.bf16.mxu0 0
    %206 = vmatmul.mubr.bf16.gmra.mxu0 %v133
    %v207 = vpop.f32.mrf.mxu0
    %v208 = vadd.f32 %v81, %v207
    %v209 = vpop.f32.mrf.mxu0
    %v210 = vpop.f32.mrf.mxu0
    %v211 = vadd.f32 %v86, %v210
    %v212 = vpop.f32.mrf.mxu0
    %213 = vmatprep.mubr.bf16.mxu0 0
    %214 = vmatmul.mubr.bf16.gmra.mxu0 %v136
    %v215 = vpop.f32.mrf.mxu0
    %v216 = vadd.f32 %v91, %v215
    %v217 = vpop.f32.mrf.mxu0
    %v218 = vpop.f32.mrf.mxu0
    %v219 = vadd.f32 %v96, %v218
    %v220 = vpop.f32.mrf.mxu0
    %221 = vmatprep.mubr.bf16.mxu0 0
    %222 = vmatmul.mubr.bf16.gmra.mxu0 %v139
    %v223 = vpop.f32.mrf.mxu0
    %v224 = vadd.f32 %v101, %v223
    %v225 = vpop.f32.mrf.mxu0
    %v226 = vpop.f32.mrf.mxu0
    %v227 = vadd.f32 %v106, %v226
    %v228 = vpop.f32.mrf.mxu0
    %229 = vdwg.mxu0
    %v230 = vmax.f32 %v200, 0.0
    %v231 = vmax.f32 %v203, 0.0
    %v232 = vmax.f32 %v208, 0.0
    %v233 = vmax.f32 %v211, 0.0
    %v234 = vmax.f32 %v216, 0.0
    %v235 = vmax.f32 %v219, 0.0
    %v236 = vmax.f32 %v224, 0.0
    %v237 = vmax.f32 %v227, 0.0
    %v238 = vpack.c.bf16 %v231, %v230
    %v239 = vpack.c.bf16 %v233, %v232
    %v240 = vpack.c.bf16 %v235, %v234
    %v241 = vpack.c.bf16 %v237, %v236
    %v242 = vld [vmem:[%s3] sm:$0xf]
    %v243 = vld [vmem:[%s3 + $0x4] sm:$0xf]
    %v244 = vld [vmem:[%s3 + $0x8] sm:$0xf]
    %v245 = vld [vmem:[%s3 + $0xc] sm:$0xf]
    %v246 = vld [vmem:[%s3 + $0x10] sm:$0xf]
    %v247 = vld [vmem:[%s3 + $0x14] sm:$0xf]
    %v248 = vld [vmem:[%s3 + $0x18] sm:$0xf]
    %v249 = vld [vmem:[%s3 + $0x1c] sm:$0xf]
    %v250 = vld [vmem:[%s4] sm:$0xff]
    %v251 = vld [vmem:[%s4 + $0x8] sm:$0xff]
    %v252 = vld [vmem:[%s4 + $0x10] sm:$0xff]
    %v253 = vld [vmem:[%s4 + $0x18] sm:$0xff]
    %v254 = vld [vmem:[%s4 + $0x20] sm:$0xff]
    %v255 = vld [vmem:[%s4 + $0x28] sm:$0xff]
    %v256 = vld [vmem:[%s4 + $0x30] sm:$0xff]
    %v257 = vld [vmem:[%s4 + $0x38] sm:$0xff]
    %259 = vset.pattern.permute.xlu0 0
    %260 = vperm.xlu0 %259, %v250
    %v261 = vpop.permute.xlu0 %260
    %264 = vset.pattern.permute.xlu0 0
    %265 = vperm.xlu0 %264, %v251
    %v266 = vpop.permute.xlu0 %265
    %269 = vset.pattern.permute.xlu0 0
    %270 = vperm.xlu0 %269, %v252
    %v271 = vpop.permute.xlu0 %270
    %274 = vset.pattern.permute.xlu0 0
    %275 = vperm.xlu0 %274, %v253
    %v276 = vpop.permute.xlu0 %275
    %279 = vset.pattern.permute.xlu0 0
    %280 = vperm.xlu0 %279, %v254
    %v281 = vpop.permute.xlu0 %280
    %284 = vset.pattern.permute.xlu0 0
    %285 = vperm.xlu0 %284, %v255
    %v286 = vpop.permute.xlu0 %285
    %289 = vset.pattern.permute.xlu0 0
    %290 = vperm.xlu0 %289, %v256
    %v291 = vpop.permute.xlu0 %290
    %294 = vset.pattern.permute.xlu0 0
    %295 = vperm.xlu0 %294, %v257
    %v296 = vpop.permute.xlu0 %295
    %v306 = vunpack.c.l.b16 %v242
    %v307 = vunpack.c.l.b16 %v243
    %v308 = vunpack.c.l.b16 %v244
    %v309 = vunpack.c.l.b16 %v245
    %v310 = vunpack.c.l.b16 %v246
    %v311 = vunpack.c.l.b16 %v247
    %v312 = vunpack.c.l.b16 %v248
    %v313 = vunpack.c.l.b16 %v249
    %v314 = vpack.c.b16 %v307, %v306
    %v315 = vpack.c.b16 %v309, %v308
    %v316 = vpack.c.b16 %v311, %v310
    %v317 = vpack.c.b16 %v313, %v312
    %vm318 = vcmask 523264
    %v320 = vsel %vm318, %v314, 0
    %v323 = vsel %vm318, %v315, 0
    %v326 = vsel %vm318, %v316, 0
    %v329 = vsel %vm318, %v317, 0
    %331 = vmatprep.subr.bf16.mxu0 0
    %332 = vmatpush1.bf16.msra.mxu0 0
    %333 = vmatprep.subr.bf16.mxu0 0
    %334 = vmatpush1.bf16.msra.mxu0 0
    %335 = vmatprep.subr.bf16.mxu0 0
    %336 = vmatpush1.bf16.msra.mxu0 0
    %337 = vmatprep.subr.bf16.mxu0 0
    %338 = vmatpush1.bf16.msra.mxu0 0
    %339 = vmatprep.subr.bf16.mxu0 0
    %340 = vmatpush1.bf16.msra.mxu0 %v241
    %341 = vmatprep.subr.bf16.mxu0 0
    %342 = vmatpush1.bf16.msra.mxu0 %v240
    %343 = vmatprep.subr.bf16.mxu0 0
    %344 = vmatpush1.bf16.msra.mxu0 %v239
    %345 = vmatprep.subr.bf16.mxu0 0
    %346 = vmatpush1.bf16.msra.mxu0 %v238
    %347 = vmatprep.subr.bf16.mxu0 0
    %348 = vmatpush2.bf16.msra.mxu0 0
    %349 = vmatprep.subr.bf16.mxu0 0
    %350 = vmatpush2.bf16.msra.mxu0 0
    %351 = vmatprep.subr.bf16.mxu0 0
    %352 = vmatpush2.bf16.msra.mxu0 0
    %353 = vmatprep.subr.bf16.mxu0 0
    %354 = vmatpush2.bf16.msra.mxu0 0
    %355 = vmatprep.subr.bf16.mxu0 0
    %356 = vmatpush2.bf16.msra.mxu0 0
    %357 = vmatprep.subr.bf16.mxu0 0
    %358 = vmatpush2.bf16.msra.mxu0 0
    %359 = vmatprep.subr.bf16.mxu0 0
    %360 = vmatpush2.bf16.msra.mxu0 0
    %361 = vmatprep.subr.bf16.mxu0 0
    %362 = vmatpush2.bf16.msra.mxu0 0
    %363 = vmatprep.mubr.bf16.mxu0 0
    %364 = vmatmul.mubr.bf16.gmra.mxu0 %v320
    %v365 = vpop.f32.mrf.mxu0
    %v366 = vadd.f32 %v261, %v365
    %v367 = vpop.f32.mrf.mxu0
    %v368 = vpop.f32.mrf.mxu0
    %v369 = vadd.f32 %v266, %v368
    %v370 = vpop.f32.mrf.mxu0
    %371 = vmatprep.mubr.bf16.mxu0 0
    %372 = vmatmul.mubr.bf16.gmra.mxu0 %v323
    %v373 = vpop.f32.mrf.mxu0
    %v374 = vadd.f32 %v271, %v373
    %v375 = vpop.f32.mrf.mxu0
    %v376 = vpop.f32.mrf.mxu0
    %v377 = vadd.f32 %v276, %v376
    %v378 = vpop.f32.mrf.mxu0
    %379 = vmatprep.mubr.bf16.mxu0 0
    %380 = vmatmul.mubr.bf16.gmra.mxu0 %v326
    %v381 = vpop.f32.mrf.mxu0
    %v382 = vadd.f32 %v281, %v381
    %v383 = vpop.f32.mrf.mxu0
    %v384 = vpop.f32.mrf.mxu0
    %v385 = vadd.f32 %v286, %v384
    %v386 = vpop.f32.mrf.mxu0
    %387 = vmatprep.mubr.bf16.mxu0 0
    %388 = vmatmul.mubr.bf16.gmra.mxu0 %v329
    %v389 = vpop.f32.mrf.mxu0
    %v390 = vadd.f32 %v291, %v389
    %v391 = vpop.f32.mrf.mxu0
    %v392 = vpop.f32.mrf.mxu0
    %v393 = vadd.f32 %v296, %v392
    %v394 = vpop.f32.mrf.mxu0
    %395 = vdwg.mxu0
    %v396 = vmax.f32 %v366, 0.0
    %v397 = vmax.f32 %v369, 0.0
    %v398 = vmax.f32 %v374, 0.0
    %v399 = vmax.f32 %v377, 0.0
    %v400 = vmax.f32 %v382, 0.0
    %v401 = vmax.f32 %v385, 0.0
    %v402 = vmax.f32 %v390, 0.0
    %v403 = vmax.f32 %v393, 0.0
    %v404 = vld [vmem:[%s5] sm:$0xff]
    %v405 = vld [vmem:[%s5 + $0x8] sm:$0xff]
    %v406 = vld [vmem:[%s5 + $0x10] sm:$0xff]
    %v407 = vld [vmem:[%s5 + $0x18] sm:$0xff]
    %v408 = vld [vmem:[%s5 + $0x20] sm:$0xff]
    %v409 = vld [vmem:[%s5 + $0x28] sm:$0xff]
    %v410 = vld [vmem:[%s5 + $0x30] sm:$0xff]
    %v411 = vld [vmem:[%s5 + $0x38] sm:$0xff]
    %413 = vset.pattern.permute.xlu0 0
    %414 = vperm.xlu0 %413, %v404
    %v415 = vpop.permute.xlu0 %414
    %418 = vset.pattern.permute.xlu0 0
    %419 = vperm.xlu0 %418, %v405
    %v420 = vpop.permute.xlu0 %419
    %423 = vset.pattern.permute.xlu0 0
    %424 = vperm.xlu0 %423, %v406
    %v425 = vpop.permute.xlu0 %424
    %428 = vset.pattern.permute.xlu0 0
    %429 = vperm.xlu0 %428, %v407
    %v430 = vpop.permute.xlu0 %429
    %433 = vset.pattern.permute.xlu0 0
    %434 = vperm.xlu0 %433, %v408
    %v435 = vpop.permute.xlu0 %434
    %438 = vset.pattern.permute.xlu0 0
    %439 = vperm.xlu0 %438, %v409
    %v440 = vpop.permute.xlu0 %439
    %443 = vset.pattern.permute.xlu0 0
    %444 = vperm.xlu0 %443, %v410
    %v445 = vpop.permute.xlu0 %444
    %448 = vset.pattern.permute.xlu0 0
    %449 = vperm.xlu0 %448, %v411
    %v450 = vpop.permute.xlu0 %449
    %v452 = vmul.f32 %v415, %v396
    %v453 = vmul.f32 %v420, %v397
    %v454 = vmul.f32 %v425, %v398
    %v455 = vmul.f32 %v430, %v399
    %v456 = vmul.f32 %v435, %v400
    %v457 = vmul.f32 %v440, %v401
    %v458 = vmul.f32 %v445, %v402
    %v459 = vmul.f32 %v450, %v403
    %v460 = vadd.f32 %v452, %v453
    %v461 = vadd.f32 %v460, %v454
    %v462 = vadd.f32 %v461, %v455
    %v463 = vadd.f32 %v462, %v456
    %v464 = vadd.f32 %v463, %v457
    %v465 = vadd.f32 %v464, %v458
    %v466 = vadd.f32 %v465, %v459
    %v467 = vrot.slane %v466, 4
    %v468 = vadd.f32 %v466, %v467
    %v469 = vrot.slane %v468, 2
    %v470 = vadd.f32 %v468, %v469
    %v471 = vrot.slane %v470, 1
    %v472 = vadd.f32 %v470, %v471
    %473 = vset.pattern.permute.xlu0 1
    %474 = vperm.xlu0 %473, %v404
    %v475 = vpop.permute.xlu0 %474
    %477 = vset.pattern.permute.xlu0 1
    %478 = vperm.xlu0 %477, %v405
    %v479 = vpop.permute.xlu0 %478
    %481 = vset.pattern.permute.xlu0 1
    %482 = vperm.xlu0 %481, %v406
    %v483 = vpop.permute.xlu0 %482
    %485 = vset.pattern.permute.xlu0 1
    %486 = vperm.xlu0 %485, %v407
    %v487 = vpop.permute.xlu0 %486
    %489 = vset.pattern.permute.xlu0 1
    %490 = vperm.xlu0 %489, %v408
    %v491 = vpop.permute.xlu0 %490
    %493 = vset.pattern.permute.xlu0 1
    %494 = vperm.xlu0 %493, %v409
    %v495 = vpop.permute.xlu0 %494
    %497 = vset.pattern.permute.xlu0 1
    %498 = vperm.xlu0 %497, %v410
    %v499 = vpop.permute.xlu0 %498
    %501 = vset.pattern.permute.xlu0 1
    %502 = vperm.xlu0 %501, %v411
    %v503 = vpop.permute.xlu0 %502
    %v505 = vmul.f32 %v475, %v396
    %v506 = vmul.f32 %v479, %v397
    %v507 = vmul.f32 %v483, %v398
    %v508 = vmul.f32 %v487, %v399
    %v509 = vmul.f32 %v491, %v400
    %v510 = vmul.f32 %v495, %v401
    %v511 = vmul.f32 %v499, %v402
    %v512 = vmul.f32 %v503, %v403
    %v513 = vadd.f32 %v505, %v506
    %v514 = vadd.f32 %v513, %v507
    %v515 = vadd.f32 %v514, %v508
    %v516 = vadd.f32 %v515, %v509
    %v517 = vadd.f32 %v516, %v510
    %v518 = vadd.f32 %v517, %v511
    %v519 = vadd.f32 %v518, %v512
    %v520 = vrot.slane %v519, 4
    %v521 = vadd.f32 %v519, %v520
    %v522 = vrot.slane %v521, 2
    %v523 = vadd.f32 %v521, %v522
    %v524 = vrot.slane %v523, 1
    %v525 = vadd.f32 %v523, %v524
    %526 = vset.pattern.permute.xlu0 2
    %527 = vperm.xlu0 %526, %v404
    %v528 = vpop.permute.xlu0 %527
    %530 = vset.pattern.permute.xlu0 2
    %531 = vperm.xlu0 %530, %v405
    %v532 = vpop.permute.xlu0 %531
    %534 = vset.pattern.permute.xlu0 2
    %535 = vperm.xlu0 %534, %v406
    %v536 = vpop.permute.xlu0 %535
    %538 = vset.pattern.permute.xlu0 2
    %539 = vperm.xlu0 %538, %v407
    %v540 = vpop.permute.xlu0 %539
    %542 = vset.pattern.permute.xlu0 2
    %543 = vperm.xlu0 %542, %v408
    %v544 = vpop.permute.xlu0 %543
    %546 = vset.pattern.permute.xlu0 2
    %547 = vperm.xlu0 %546, %v409
    %v548 = vpop.permute.xlu0 %547
    %550 = vset.pattern.permute.xlu0 2
    %551 = vperm.xlu0 %550, %v410
    %v552 = vpop.permute.xlu0 %551
    %554 = vset.pattern.permute.xlu0 2
    %555 = vperm.xlu0 %554, %v411
    %v556 = vpop.permute.xlu0 %555
    %v558 = vmul.f32 %v528, %v396
    %v559 = vmul.f32 %v532, %v397
    %v560 = vmul.f32 %v536, %v398
    %v561 = vmul.f32 %v540, %v399
    %v562 = vmul.f32 %v544, %v400
    %v563 = vmul.f32 %v548, %v401
    %v564 = vmul.f32 %v552, %v402
    %v565 = vmul.f32 %v556, %v403
    %v566 = vadd.f32 %v558, %v559
    %v567 = vadd.f32 %v566, %v560
    %v568 = vadd.f32 %v567, %v561
    %v569 = vadd.f32 %v568, %v562
    %v570 = vadd.f32 %v569, %v563
    %v571 = vadd.f32 %v570, %v564
    %v572 = vadd.f32 %v571, %v565
    %v573 = vrot.slane %v572, 4
    %v574 = vadd.f32 %v572, %v573
    %v575 = vrot.slane %v574, 2
    %v576 = vadd.f32 %v574, %v575
    %v577 = vrot.slane %v576, 1
    %v578 = vadd.f32 %v576, %v577
    %579 = vset.pattern.permute.xlu0 3
    %580 = vperm.xlu0 %579, %v404
    %v581 = vpop.permute.xlu0 %580
    %583 = vset.pattern.permute.xlu0 3
    %584 = vperm.xlu0 %583, %v405
    %v585 = vpop.permute.xlu0 %584
    %587 = vset.pattern.permute.xlu0 3
    %588 = vperm.xlu0 %587, %v406
    %v589 = vpop.permute.xlu0 %588
    %591 = vset.pattern.permute.xlu0 3
    %592 = vperm.xlu0 %591, %v407
    %v593 = vpop.permute.xlu0 %592
    %595 = vset.pattern.permute.xlu0 3
    %596 = vperm.xlu0 %595, %v408
    %v597 = vpop.permute.xlu0 %596
    %599 = vset.pattern.permute.xlu0 3
    %600 = vperm.xlu0 %599, %v409
    %v601 = vpop.permute.xlu0 %600
    %603 = vset.pattern.permute.xlu0 3
    %604 = vperm.xlu0 %603, %v410
    %v605 = vpop.permute.xlu0 %604
    %607 = vset.pattern.permute.xlu0 3
    %608 = vperm.xlu0 %607, %v411
    %v609 = vpop.permute.xlu0 %608
    %v611 = vmul.f32 %v581, %v396
    %v612 = vmul.f32 %v585, %v397
    %v613 = vmul.f32 %v589, %v398
    %v614 = vmul.f32 %v593, %v399
    %v615 = vmul.f32 %v597, %v400
    %v616 = vmul.f32 %v601, %v401
    %v617 = vmul.f32 %v605, %v402
    %v618 = vmul.f32 %v609, %v403
    %v619 = vadd.f32 %v611, %v612
    %v620 = vadd.f32 %v619, %v613
    %v621 = vadd.f32 %v620, %v614
    %v622 = vadd.f32 %v621, %v615
    %v623 = vadd.f32 %v622, %v616
    %v624 = vadd.f32 %v623, %v617
    %v625 = vadd.f32 %v624, %v618
    %v626 = vrot.slane %v625, 4
    %v627 = vadd.f32 %v625, %v626
    %v628 = vrot.slane %v627, 2
    %v629 = vadd.f32 %v627, %v628
    %v630 = vrot.slane %v629, 1
    %v631 = vadd.f32 %v629, %v630
    %vm632 = vcmask 1040384
    %v633 = vsel %vm632, %v472, %v525
    %vm634 = vcmask 1041408
    %v635 = vsel %vm634, %v633, %v578
    %vm636 = vcmask 1042432
    %v637 = vsel %vm636, %v635, %v631
    %v638 = vld [vmem:[%s6] sm:$0xf]
    %640 = vset.pattern.permute.xlu0 0
    %641 = vperm.xlu0 %640, %v638
    %v642 = vpop.permute.xlu0 %641
    %v644 = vadd.f32 %v637, %v642
    %v645 = vxor.u32 %v644, 2147483648
    %v646 = vmul.f32 %v645, 1.442695
    %v647 = vpow.pop %v646
    %v648 = vadd.f32 %v647, 1.0
    %v649 = vrcp.pop %v648
    %v650 = vmul.f32 1.0, %v649
    %651 = vst [vmem:[#allocation2] sm:$0xf] %v650
    // Predicated region
    $region30: #{actor_forward.1} parent=1 // pred_check
      _
    $region31: #{actor_forward.1} parent=1 // pred_check_branch
      %653 = sbr.rel (0) target = $region33
    $region32: #{actor_forward.1} parent=1 // pred_region
      %s655 = ssub.s32 64, 64
      %656 = vsyncadd [#allocation3], %s655
      %s658 = sshll.u32 [#allocation2], 4
      %s659 = int_to_ptr.vmem [resolvable:$true] %s658
      %661 = dma.vmem_to_hbm [thread:$0]  %s659, 64, %s7, [#allocation3]
    $region33: #{actor_forward.1} parent=1 // pred_fallthru
      _
    // Predicated region
    $region34: #{actor_forward.1} parent=1 // pred_check
      _
    $region35: #{actor_forward.1} parent=1 // pred_check_branch
      %663 = sbr.rel (0) target = $region37
    $region36: #{actor_forward.1} parent=1 // pred_region
      %664 = dma.done [#allocation3], 64
    $region37: #{actor_forward.1} parent=1 // pred_fallthru
      _
    %665 = vsyncpa [#allocation3], 1

</llo_original>
